<compile_context>
chip_gen: v7x
topology: tpu7x:2x2x1
jax: 0.10.0
libtpu: 0.0.40
codegen_flags: <defaults>
</compile_context>

<pallas_src>
import functools

import jax
import jax.numpy as jnp
from jax.experimental import pallas as pl
from jax.experimental.pallas import tpu as pltpu


def _cdiv(a, b):
    return -(-a // b)


def _spatial_attention_kernel(x_ref, m_ref, bs_ref, vs_ref, o_ref, *, n_real):
    bb, n, ft = x_ref.shape          # (Bb, N_pad, F*T)

    x = x_ref[...]                   # (Bb, N, F*T)  bf16
    mq = m_ref[...]                  # (F*T, F*T)    bf16   fused quadratic-form weight
    bs = bs_ref[...]                 # (N, N)        f32
    vs = vs_ref[...]                 # (N, N)        bf16

    # ---- projection: one big MXU GEMM over all Bb*N rows -------------------
    # n is padded to a multiple of 8 in the wrapper, so merging (Bb, N) into
    # the matmul M-dimension is a relayout-free reshape.
    x2 = x.reshape(bb * n, ft)
    y2 = jnp.dot(x2, mq, preferred_element_type=jnp.float32)       # (Bb*N, F*T) f32
    y = y2.reshape(bb, n, ft).astype(jnp.bfloat16)

    # prod[b, i, j] = sum_g y[b, i, g] * x[b, j, g]   (== LHS @ RHS^T of the module)
    prod = jnp.einsum('big,bjg->bij', y, x,
                      preferred_element_type=jnp.float32)          # (Bb, N, N) f32

    neg = jnp.float32(-1e30)

    # ---- per-sample epilogue: sigmoid, Vs @ (.), softmax(dim=1), store -----
    # 2-D MXU matmuls with vs as a single (N, N) operand: no broadcast copy.
    for b in range(bb):                                   # static unroll, Bb is small
        sg = jax.nn.sigmoid(prod[b] + bs)                 # (N, N) f32
        s = jnp.dot(vs, sg.astype(jnp.bfloat16),
                    preferred_element_type=jnp.float32)   # (N, N) f32
        if n_real < n:                                    # mask padded rows (static branch)
            rows = jax.lax.broadcasted_iota(jnp.int32, (n, n), 0)
            s = jnp.where(rows < n_real, s, neg)
        mx = jnp.max(s, axis=0, keepdims=True)
        e = jnp.exp(s - mx)
        denom = jnp.sum(e, axis=0, keepdims=True)
        out = e * pl.reciprocal(denom, approx=False)      # exact: rows sum to 1
        o_ref[b] = out.astype(o_ref.dtype)


def spatial_attention(x, w1, w2, w3, bs, vs, *, block_b=None):
    """x: (B, N, F_in, T) float32; returns (B, N, N) float32."""
    B, N, F_in, T = x.shape
    ft = F_in * T
    n_pad = _cdiv(N, 8) * 8

    # Per-chip VMEM budget (v5e/v6e: 128 MiB, v7x: 64 MiB per TensorCore).
    try:
        vmem_cap = int(pltpu.get_tpu_info().vmem_capacity_bytes)
    except Exception:
        vmem_cap = 64 * 1024 * 1024          # conservative (v7x-sized) fallback
    vmem_limit = min(int(0.85 * vmem_cap), 100 * 1024 * 1024)

    if block_b is None:
        # Rough per-sample footprint: double-buffered x (bf16) + out (f32)
        # tiles plus ~4 live (N, N) f32 temporaries (prod / sigmoid / scores / exp).
        per_sample = (2 * (n_pad * ft * 2)
                      + 2 * (n_pad * n_pad * 4)
                      + 4 * (n_pad * n_pad * 4))
        block_b = max(1, min(32, (vmem_cap // 2) // max(per_sample, 1)))

    bb = max(1, min(block_b, B))
    steps = _cdiv(B, bb)
    if steps < 2 and B >= 2:
        steps = 2                             # keep both v7x TensorCores busy
    bb = _cdiv(B, steps)                      # equalize block size, minimize padding
    steps = _cdiv(B, bb)
    b_pad = steps * bb

    # ---- wrapper-side layout prep (all free / one-off) ----------------------
    x2 = x.reshape(B, N, ft)
    x2 = jnp.pad(x2, ((0, b_pad - B), (0, n_pad - N), (0, 0))).astype(jnp.bfloat16)

    # Fused quadratic-form weight:
    #   prod = Xf @ Mq @ Xf^T   with   Mq[(f,t),(g,s)] = w1[t] * w2[f,s] * w3[g]
    mq = jnp.einsum('t,fs,g->ftgs',
                    w1.astype(jnp.float32),
                    w2.astype(jnp.float32),
                    w3.astype(jnp.float32)).reshape(ft, ft).astype(jnp.bfloat16)

    bs2 = jnp.pad(bs.reshape(N, N).astype(jnp.float32),
                  ((0, n_pad - N), (0, n_pad - N)))
    vs2 = jnp.pad(vs.astype(jnp.float32),
                  ((0, n_pad - N), (0, n_pad - N))).astype(jnp.bfloat16)

    kernel = functools.partial(_spatial_attention_kernel, n_real=N)

    out = pl.pallas_call(
        kernel,
        out_shape=jax.ShapeDtypeStruct((b_pad, n_pad, n_pad), jnp.float32),
        grid=(steps,),
        in_specs=[
            pl.BlockSpec((bb, n_pad, ft), lambda i: (i, 0, 0)),
            pl.BlockSpec((ft, ft), lambda i: (0, 0)),
            pl.BlockSpec((n_pad, n_pad), lambda i: (0, 0)),
            pl.BlockSpec((n_pad, n_pad), lambda i: (0, 0)),
        ],
        out_specs=pl.BlockSpec((bb, n_pad, n_pad), lambda i: (i, 0, 0)),
        compiler_params=pltpu.CompilerParams(
            dimension_semantics=("parallel",),
            vmem_limit_bytes=vmem_limit,
        ),
    )(x2, mq, bs2, vs2)

    return out[:B, :N, :N]


def init_params(key, in_channels, num_vertices, num_timesteps):
    """Deterministic synthetic init mirroring the module's parameter shapes:
       uniform for 1-D params, xavier-uniform for >=2-D params."""
    k1, k2, k3, k4, k5 = jax.random.split(key, 5)

    def xavier(k, shape):
        fan_in, fan_out = shape[-1], shape[-2]
        bound = jnp.sqrt(6.0 / (fan_in + fan_out))
        return jax.random.uniform(k, shape, jnp.float32, -bound, bound)

    w1 = jax.random.uniform(k1, (num_timesteps,), jnp.float32)                 # uniform_
    w2 = xavier(k2, (in_channels, num_timesteps))                              # xavier
    w3 = jax.random.uniform(k3, (in_channels,), jnp.float32)                   # uniform_
    bs = xavier(k4, (1, num_vertices, num_vertices))                           # xavier
    vs = xavier(k5, (num_vertices, num_vertices))                              # xavier
    return w1, w2, w3, bs, vs


def reference_forward(x, w1, w2, w3, bs, vs):
    """Pure-JAX reference reproducing the PyTorch forward exactly (f32)."""
    lhs = jnp.einsum('bnft,t->bnf', x, w1)
    lhs = jnp.einsum('bnf,ft->bnt', lhs, w2)
    rhs = jnp.einsum('f,bnft->bnt', w3, x)                # then transposed to (B, T, N)
    prod = jnp.einsum('bnt,bmt->bnm', lhs, rhs) + bs      # (B, N, N)
    sig = jax.nn.sigmoid(prod)
    s = jnp.einsum('nm,bmk->bnk', vs, sig)
    return jax.nn.softmax(s, axis=1)


if __name__ == "__main__":
    B, N, F_in, T = 2, 16, 4, 8

    key = jax.random.PRNGKey(0)
    kx, kp = jax.random.split(key)
    x = jax.random.normal(kx, (B, N, F_in, T), dtype=jnp.float32)
    w1, w2, w3, bs, vs = init_params(kp, F_in, N, T)

    out = spatial_attention(x, w1, w2, w3, bs, vs)
    out = jax.block_until_ready(out)

    ref = reference_forward(x, w1, w2, w3, bs, vs)
    assert out.shape == (B, N, N)
    assert bool(jnp.isfinite(out).all())
    # Tolerance vs strict f32: bf16 matmul inputs (f32 accumulation) plus the
    # fused-weight summation reorder; softmax outputs stay well inside 1e-2.
    assert jnp.allclose(out, ref, atol=1e-2, rtol=1e-2), "mismatch vs reference"

    print("KERNEL_OK")
</pallas_src>

<mosaic_0001>
module attributes {stable_mosaic.version = 11 : i64} {
  func.func @_spatial_attention_kernel(%arg0: i32, %arg1: memref<1x16x32xbf16, #tpu.memory_space<vmem>>, %arg2: memref<32x32xbf16, #tpu.memory_space<vmem>>, %arg3: memref<16x16xf32, #tpu.memory_space<vmem>>, %arg4: memref<16x16xbf16, #tpu.memory_space<vmem>>, %arg5: memref<1x16x16xf32, #tpu.memory_space<vmem>>) attributes {dimension_semantics = [#tpu.dimension_semantics<parallel>], iteration_bounds = array<i64: 2>, scalar_prefetch = 0 : i64, scratch_operands = 0 : i64, tpu.core_type = #tpu.core_type<tc>, window_params = [{transform_indices = @transform_0, window_bounds = array<i64: 1, 16, 32>}, {pipeline_mode = #tpu.pipeline_mode<synchronous>, transform_indices = @transform_1, window_bounds = array<i64: 32, 32>}, {pipeline_mode = #tpu.pipeline_mode<synchronous>, transform_indices = @transform_2, window_bounds = array<i64: 16, 16>}, {pipeline_mode = #tpu.pipeline_mode<synchronous>, transform_indices = @transform_3, window_bounds = array<i64: 16, 16>}, {transform_indices = @transform_4, window_bounds = array<i64: 1, 16, 16>}]} {
    %c0 = arith.constant 0 : index
    %c0_0 = arith.constant 0 : index
    %c0_1 = arith.constant 0 : index
    %0 = vector.load %arg1[%c0, %c0_0, %c0_1] : memref<1x16x32xbf16, #tpu.memory_space<vmem>>, vector<1x16x32xbf16>
    %c0_2 = arith.constant 0 : index
    %c0_3 = arith.constant 0 : index
    %1 = vector.load %arg2[%c0_2, %c0_3] : memref<32x32xbf16, #tpu.memory_space<vmem>>, vector<32x32xbf16>
    %c0_4 = arith.constant 0 : index
    %c0_5 = arith.constant 0 : index
    %2 = vector.load %arg3[%c0_4, %c0_5] : memref<16x16xf32, #tpu.memory_space<vmem>>, vector<16x16xf32>
    %c0_6 = arith.constant 0 : index
    %c0_7 = arith.constant 0 : index
    %3 = vector.load %arg4[%c0_6, %c0_7] : memref<16x16xbf16, #tpu.memory_space<vmem>>, vector<16x16xbf16>
    %4 = vector.shape_cast %0 : vector<1x16x32xbf16> to vector<16x32xbf16>
    %cst = arith.constant dense<0.000000e+00> : vector<16x32xf32>
    %5 = tpu.matmul %4, %1, %cst {dimension_numbers = #tpu.dot_dimension_numbers<[1], [0], [0], [1], [0, 0, 1, 1], [], []>} : vector<16x32xbf16>, vector<32x32xbf16>, vector<16x32xf32> -> vector<16x32xf32>
    %6 = vector.shape_cast %5 : vector<16x32xf32> to vector<1x16x32xf32>
    %7 = arith.truncf %6 : vector<1x16x32xf32> to vector<1x16x32xbf16>
    "tpu.trace_start"() <{level = 10 : i32, message = "big,bjg->bij"}> : () -> ()
    %cst_8 = arith.constant dense<0.000000e+00> : vector<1x16x16xf32>
    %8 = tpu.matmul %7, %0, %cst_8 {dimension_numbers = #tpu.dot_dimension_numbers<[2], [2], [1], [1], [0, 0, 0, 1, 1, 1], [0], [0]>} : vector<1x16x32xbf16>, vector<1x16x32xbf16>, vector<1x16x16xf32> -> vector<1x16x16xf32>
    "tpu.trace_stop"() : () -> ()
    %9 = vector.shape_cast %8 : vector<1x16x16xf32> to vector<16x16xf32>
    %10 = arith.addf %9, %2 : vector<16x16xf32>
    %11 = arith.negf %10 : vector<16x16xf32>
    %12 = math.exp %11 : vector<16x16xf32>
    %cst_9 = arith.constant 1.000000e+00 : f32
    %13 = vector.broadcast %cst_9 : f32 to vector<16x16xf32>
    %14 = arith.addf %13, %12 : vector<16x16xf32>
    %15 = arith.divf %13, %14 : vector<16x16xf32>
    %16 = arith.truncf %15 : vector<16x16xf32> to vector<16x16xbf16>
    %cst_10 = arith.constant dense<0.000000e+00> : vector<16x16xf32>
    %17 = tpu.matmul %3, %16, %cst_10 {dimension_numbers = #tpu.dot_dimension_numbers<[1], [0], [0], [1], [0, 0, 1, 1], [], []>} : vector<16x16xbf16>, vector<16x16xbf16>, vector<16x16xf32> -> vector<16x16xf32>
    %cst_11 = arith.constant dense<0xFF800000> : vector<16xf32>
    %18 = vector.multi_reduction <maximumf>, %17, %cst_11 [0] : vector<16x16xf32> to vector<16xf32>
    %19 = vector.shape_cast %18 : vector<16xf32> to vector<1x16xf32>
    %20 = vector.broadcast %19 : vector<1x16xf32> to vector<16x16xf32>
    %21 = arith.subf %17, %20 : vector<16x16xf32>
    %22 = math.exp %21 : vector<16x16xf32>
    %cst_12 = arith.constant dense<0.000000e+00> : vector<16xf32>
    %23 = vector.multi_reduction <add>, %22, %cst_12 [0] : vector<16x16xf32> to vector<16xf32>
    %24 = vector.shape_cast %23 : vector<16xf32> to vector<1x16xf32>
    %25 = tpu.reciprocal %24 : vector<1x16xf32> -> vector<1x16xf32>
    %26 = vector.broadcast %25 : vector<1x16xf32> to vector<16x16xf32>
    %27 = arith.mulf %22, %26 : vector<16x16xf32>
    %c0_13 = arith.constant 0 : index
    %c0_14 = arith.constant 0 : index
    %c0_15 = arith.constant 0 : index
    %28 = vector.load %arg5[%c0_13, %c0_14, %c0_15] : memref<1x16x16xf32, #tpu.memory_space<vmem>>, vector<1x16x16xf32>
    %29 = vector.shape_cast %28 : vector<1x16x16xf32> to vector<16x16xf32>
    %30 = vector.shape_cast %27 : vector<16x16xf32> to vector<1x16x16xf32>
    tpu.vector_store %arg5[%c0_13, %c0_14, %c0_15], %30 {strides = array<i32>} : memref<1x16x16xf32, #tpu.memory_space<vmem>>, vector<1x16x16xf32>,
    return
  }
  func.func @transform_0(%arg0: i32) -> (i32, i32, i32) {
    %c0_i32 = arith.constant 0 : i32
    %c0_i32_0 = arith.constant 0 : i32
    %c0_i32_1 = arith.constant 0 : i32
    return %arg0, %c0_i32, %c0_i32_0 : i32, i32, i32
  }
  func.func @transform_1(%arg0: i32) -> (i32, i32) {
    %c0_i32 = arith.constant 0 : i32
    %c0_i32_0 = arith.constant 0 : i32
    %c0_i32_1 = arith.constant 0 : i32
    return %c0_i32, %c0_i32_0 : i32, i32
  }
  func.func @transform_2(%arg0: i32) -> (i32, i32) {
    %c0_i32 = arith.constant 0 : i32
    %c0_i32_0 = arith.constant 0 : i32
    %c0_i32_1 = arith.constant 0 : i32
    return %c0_i32, %c0_i32_0 : i32, i32
  }
  func.func @transform_3(%arg0: i32) -> (i32, i32) {
    %c0_i32 = arith.constant 0 : i32
    %c0_i32_0 = arith.constant 0 : i32
    %c0_i32_1 = arith.constant 0 : i32
    return %c0_i32, %c0_i32_0 : i32, i32
  }
  func.func @transform_4(%arg0: i32) -> (i32, i32, i32) {
    %c0_i32 = arith.constant 0 : i32
    %c0_i32_0 = arith.constant 0 : i32
    %c0_i32_1 = arith.constant 0 : i32
    return %arg0, %c0_i32, %c0_i32_0 : i32, i32, i32
  }
}

</mosaic_0001>

<llo_original>
// kernel: tpu_custom_call.1
$region0: #{tpu_custom_call.1}
  #allocation0 [shape = 'u32[]', space=smem, size = 0x4, offset = 0x4, fixed_abs, tag = 'smem constant byte address 0x4 - core index']
  #allocation1 [shape = 'u32[144,128]{1,0:T(1,128)}', space=vmem, size = 0x12000, scoped, tag = 'internal scratch']
  %s0 = inlined_call_operand.hbm [shape: bf16[2,16,32], index: 0, kind: input, shape index: {}]
  %s1 = inlined_call_operand.hbm [shape: bf16[32,32], index: 1, kind: input, shape index: {}]
  %s2 = inlined_call_operand.hbm [shape: f32[16,16], index: 2, kind: input, shape index: {}]
  %s3 = inlined_call_operand.vmem [shape: bf16[16,16], index: 3, kind: input, shape index: {}]
  %s4 = inlined_call_operand.hbm [shape: f32[2,16,16], index: 4, kind: output, shape index: {}]
  %s5 = sld [smem:[#allocation0]]
  $region61: #{tpu_custom_call.1} parent=0
    _
  %s7 = ssub.s32 1, %s5
  %s8 = scalar_select 0, %s7, %s5
  $region1: #{tpu_custom_call.1} parent=0
    #allocation2 [shape = 'u8[8192]{0}', space=vmem, size = 0x2000, scoped, tag = 'input window, operand 0']
    #allocation3 [shape = 's32[2]{0}', space=sflag, size = 0x8, scoped, tag = 'scoped memory for tpu_custom_call.1']
    #allocation4 [shape = 's32[2]{0}', space=sflag, size = 0x8, scoped, tag = 'scoped memory for tpu_custom_call.1']
    #allocation5 [shape = 'u8[8192]{0}', space=vmem, size = 0x2000, scoped, tag = 'input window, operand 1, single buffered']
    #allocation6 [shape = 's32[1]{0}', space=sflag, size = 0x4, scoped, tag = 'scoped memory for tpu_custom_call.1']
    #allocation7 [shape = 'u8[8192]{0}', space=vmem, size = 0x2000, scoped, tag = 'input window, operand 2, single buffered']
    #allocation8 [shape = 'u8[16384]{0}', space=vmem, size = 0x4000, scoped, tag = 'output window, operand 0']
    %9 = vsyncpa [#allocation3], 0
    %s10 = scalar_lea.sflag [#allocation3], 1
    %11 = vsyncpa %s10, 0
    %12 = vsyncpa [#allocation6], 0
    %13 = vsyncpa [#allocation4], 0
    %s14 = scalar_lea.sflag [#allocation4], 1
    %15 = vsyncpa %s14, 0
    loop: start=0, step=1, limit=4
    $region2: #{tpu_custom_call.1} parent=1 // loop_pre_header
      _
    $region3: #{tpu_custom_call.1} parent=1 // loop_header
      %s17 = sphi 0, %s21
      %p18 = scmp.ge.s32.totalorder %s17, 4
      %s27 = sphi 0, %s29
      %s30 = sphi 0, %s27
      %s31 = sphi 0, %s30
      %s47 = sphi 0, %s31
      %s51 = sphi 0, %s51
      %s53 = sphi 0, %s51
      %s54 = sphi 0, %s53
      %s68 = sphi 0, %s54
      %s72 = sphi 0, %s72
      %s74 = sphi 0, %s72
      %s75 = sphi 0, %s74
      %s89 = sphi 0, %s75
      %s93 = sphi 0, %s93
      %s95 = sphi 0, %s93
      %s96 = sphi 0, %s95
      %s110 = sphi 0, %s96
      %s116 = sphi 0, %s118
      %s119 = sphi 0, %s116
      %s120 = sphi 0, %s119
      %s136 = sphi 0, %s120
    $region4: #{tpu_custom_call.1} parent=1 // loop_header_branch
      %20 = sbr.rel (%p18) target = $region8
    $region5: #{tpu_custom_call.1} parent=1 // loop_body
      %s22 = ssub.s32 %s17, 1
      %s23 = ssub.s32 %s17, 2
      %s24 = sadd.s32 %s17, 1
      %s25 = ssub.s32 %s17, %s24
      %p26 = scmp.eq.s32.totalorder %s25, 0
      %s28 = sadd.s32 %s27, 1
      %s29 = scalar_select %p26, %s27, %s28
      %p32 = pneg %p26
      %p33 = scmp.eq.s32.totalorder %s17, 1
      %p34 = por %p32, %p33
      %p35 = scmp.ne.s32.totalorder %s27, %s30
      %p36 = scmp.eq.s32.totalorder %s17, 0
      %p37 = por %p35, %p36
      %p38 = scmp.ne.s32.totalorder %s27, %s30
      %p39 = scmp.eq.s32.totalorder %s22, 1
      %p40 = por %p38, %p39
      %p41 = scmp.ne.s32.totalorder %s30, %s31
      %p42 = scmp.eq.s32.totalorder %s22, 0
      %p43 = por %p41, %p42
      %p44 = scmp.ne.s32.totalorder %s30, %s31
      %p45 = scmp.eq.s32.totalorder %s23, 1
      %p46 = por %p44, %p45
      %p48 = scmp.ne.s32.totalorder %s31, %s47
      %p49 = scmp.eq.s32.totalorder %s23, 0
      %p50 = por %p48, %p49
      %s52 = sadd.s32 %s51, 1
      %p55 = scmp.eq.s32.totalorder %s17, 1
      %p56 = scmp.ne.s32.totalorder %s51, %s53
      %p57 = scmp.eq.s32.totalorder %s17, 0
      %p58 = por %p56, %p57
      %p59 = scmp.ne.s32.totalorder %s51, %s53
      %p60 = scmp.eq.s32.totalorder %s22, 1
      %p61 = por %p59, %p60
      %p62 = scmp.ne.s32.totalorder %s53, %s54
      %p63 = scmp.eq.s32.totalorder %s22, 0
      %p64 = por %p62, %p63
      %p65 = scmp.ne.s32.totalorder %s53, %s54
      %p66 = scmp.eq.s32.totalorder %s23, 1
      %p67 = por %p65, %p66
      %p69 = scmp.ne.s32.totalorder %s54, %s68
      %p70 = scmp.eq.s32.totalorder %s23, 0
      %p71 = por %p69, %p70
      %s73 = sadd.s32 %s72, 1
      %p76 = scmp.eq.s32.totalorder %s17, 1
      %p77 = scmp.ne.s32.totalorder %s72, %s74
      %p78 = scmp.eq.s32.totalorder %s17, 0
      %p79 = por %p77, %p78
      %p80 = scmp.ne.s32.totalorder %s72, %s74
      %p81 = scmp.eq.s32.totalorder %s22, 1
      %p82 = por %p80, %p81
      %p83 = scmp.ne.s32.totalorder %s74, %s75
      %p84 = scmp.eq.s32.totalorder %s22, 0
      %p85 = por %p83, %p84
      %p86 = scmp.ne.s32.totalorder %s74, %s75
      %p87 = scmp.eq.s32.totalorder %s23, 1
      %p88 = por %p86, %p87
      %p90 = scmp.ne.s32.totalorder %s75, %s89
      %p91 = scmp.eq.s32.totalorder %s23, 0
      %p92 = por %p90, %p91
      %s94 = sadd.s32 %s93, 1
      %p97 = scmp.eq.s32.totalorder %s17, 1
      %p98 = scmp.ne.s32.totalorder %s93, %s95
      %p99 = scmp.eq.s32.totalorder %s17, 0
      %p100 = por %p98, %p99
      %p101 = scmp.ne.s32.totalorder %s93, %s95
      %p102 = scmp.eq.s32.totalorder %s22, 1
      %p103 = por %p101, %p102
      %p104 = scmp.ne.s32.totalorder %s95, %s96
      %p105 = scmp.eq.s32.totalorder %s22, 0
      %p106 = por %p104, %p105
      %p107 = scmp.ne.s32.totalorder %s95, %s96
      %p108 = scmp.eq.s32.totalorder %s23, 1
      %p109 = por %p107, %p108
      %p111 = scmp.ne.s32.totalorder %s96, %s110
      %p112 = scmp.eq.s32.totalorder %s23, 0
      %p113 = por %p111, %p112
      %s114 = ssub.s32 %s17, %s24
      %p115 = scmp.eq.s32.totalorder %s114, 0
      %s117 = sadd.s32 %s116, 1
      %s118 = scalar_select %p115, %s116, %s117
      %p121 = pneg %p115
      %p122 = scmp.eq.s32.totalorder %s17, 1
      %p123 = por %p121, %p122
      %p124 = scmp.ne.s32.totalorder %s116, %s119
      %p125 = scmp.eq.s32.totalorder %s17, 0
      %p126 = por %p124, %p125
      %p127 = scmp.ne.s32.totalorder %s116, %s119
      %p128 = scmp.eq.s32.totalorder %s22, 1
      %p129 = por %p127, %p128
      %p130 = scmp.ne.s32.totalorder %s119, %s120
      %p131 = scmp.eq.s32.totalorder %s22, 0
      %p132 = por %p130, %p131
      %p133 = scmp.ne.s32.totalorder %s119, %s120
      %p134 = scmp.eq.s32.totalorder %s23, 1
      %p135 = por %p133, %p134
      %p137 = scmp.ne.s32.totalorder %s120, %s136
      %p138 = scmp.eq.s32.totalorder %s23, 0
      %p139 = por %p137, %p138
      %p140 = scmp.le.s32.totalorder 1, %s17
      %p141 = scmp.lt.s32.totalorder %s17, 3
      %p142 = pnand %p140, %p141
      %p143 = pneg %p142
      // Predicated region
      $region9: #{tpu_custom_call.1} parent=5 // pred_check
        _
      $region10: #{tpu_custom_call.1} parent=5 // pred_check_branch
        %145 = sbr.rel (%p142) target = $region12
      $region11: #{tpu_custom_call.1} parent=5 // pred_region
        %s146 = ssub.s32 %s17, 1
        // Predicated region
        $region13: #{tpu_custom_call.1} parent=11 // pred_check
          %p147 = pneg %p64
        $region14: #{tpu_custom_call.1} parent=11 // pred_check_branch
          %149 = sbr.rel (%p147) target = $region16
        $region15: #{tpu_custom_call.1} parent=11 // pred_region
          %s151 = ssub.s32 256, 256
          %152 = vsyncadd [#allocation6], %s151
          %s153 = sshll.u32 [#allocation5], 4
          %s154 = int_to_ptr.vmem [resolvable:$true] %s153
          %159 = dma.hbm_to_vmem [thread:$0]  %s1, 256, %s154, [#allocation6], 64, 64, 4
        $region16: #{tpu_custom_call.1} parent=11 // pred_fallthru
          _
        // Predicated region
        $region17: #{tpu_custom_call.1} parent=11 // pred_check
          %p160 = pneg %p85
        $region18: #{tpu_custom_call.1} parent=11 // pred_check_branch
          %162 = sbr.rel (%p160) target = $region20
        $region19: #{tpu_custom_call.1} parent=11 // pred_region
          %s164 = ssub.s32 256, 256
          %165 = vsyncadd [#allocation6], %s164
          %s166 = sshll.u32 [#allocation7], 4
          %s167 = int_to_ptr.vmem [resolvable:$true] %s166
          %172 = dma.hbm_to_vmem [thread:$0]  %s2, 256, %s167, [#allocation6], 128, 128, 8
        $region20: #{tpu_custom_call.1} parent=11 // pred_fallthru
          _
        // Predicated region
        $region21: #{tpu_custom_call.1} parent=11 // pred_check
          %p173 = pneg %p106
        $region22: #{tpu_custom_call.1} parent=11 // pred_check_branch
          %175 = sbr.rel (%p173) target = $region24
        $region23: #{tpu_custom_call.1} parent=11 // pred_region
          _
        $region24: #{tpu_custom_call.1} parent=11 // pred_fallthru
          _
      $region12: #{tpu_custom_call.1} parent=5 // pred_fallthru
        _
      %p176 = scmp.lt.s32.totalorder %s17, 2
      // Predicated region
      $region25: #{tpu_custom_call.1} parent=5 // pred_check
        %p177 = pneg %p176
      $region26: #{tpu_custom_call.1} parent=5 // pred_check_branch
        %179 = sbr.rel (%p177) target = $region28
      $region27: #{tpu_custom_call.1} parent=5 // pred_region
        // Predicated region
        $region29: #{tpu_custom_call.1} parent=27 // pred_check
          %p180 = pneg %p37
        $region30: #{tpu_custom_call.1} parent=27 // pred_check_branch
          %182 = sbr.rel (%p180) target = $region32
        $region31: #{tpu_custom_call.1} parent=27 // pred_region
          %s183 = sand.u32 %s27, 1
          %s184 = scalar_lea.sflag [#allocation3], %s183
          %s185 = sand.u32 %s27, 1
          %s186 = smul.addr %s185, 8
          %s187 = scalar_lea.vmem [#allocation2], %s186
          %s189 = ssub.s32 128, 128
          %190 = vsyncadd %s184, %s189
          %s191 = smul.addr %s17, 2
          %s192 = smul.addr %s191, 64
          %s193 = scalar_lea.hbm %s0, %s192
          %s194 = sshll.u32 %s187, 4
          %s195 = int_to_ptr.vmem [resolvable:$true] %s194
          %200 = dma.hbm_to_vmem [thread:$0]  %s193, 128, %s195, %s184, 64, 64, 4
        $region32: #{tpu_custom_call.1} parent=27 // pred_fallthru
          _
      $region28: #{tpu_custom_call.1} parent=5 // pred_fallthru
        _
      %p201 = scmp.le.s32.totalorder 1, %s17
      %p202 = scmp.lt.s32.totalorder %s17, 3
      %p203 = pnand %p201, %p202
      %p204 = pneg %p203
      // Predicated region
      $region33: #{tpu_custom_call.1} parent=5 // pred_check
        _
      $region34: #{tpu_custom_call.1} parent=5 // pred_check_branch
        %206 = sbr.rel (%p203) target = $region36
      $region35: #{tpu_custom_call.1} parent=5 // pred_region
        %s207 = ssub.s32 %s17, 1
        %s208 = sand.u32 %s30, 1
        %s209 = scalar_lea.sflag [#allocation3], %s208
        %s210 = sand.u32 %s30, 1
        %s211 = smul.addr %s210, 8
        %s212 = scalar_lea.vmem [#allocation2], %s211
        // Predicated region
        $region37: #{tpu_custom_call.1} parent=35 // pred_check
          %p213 = pneg %p43
        $region38: #{tpu_custom_call.1} parent=35 // pred_check_branch
          %215 = sbr.rel (%p213) target = $region40
        $region39: #{tpu_custom_call.1} parent=35 // pred_region
          %216 = dma.done %s209, 128
        $region40: #{tpu_custom_call.1} parent=35 // pred_fallthru
          _
        // Predicated region
        $region41: #{tpu_custom_call.1} parent=35 // pred_check
          %p217 = pneg %p64
        $region42: #{tpu_custom_call.1} parent=35 // pred_check_branch
          %219 = sbr.rel (%p217) target = $region44
        $region43: #{tpu_custom_call.1} parent=35 // pred_region
          %220 = dma.done [#allocation6], 256
        $region44: #{tpu_custom_call.1} parent=35 // pred_fallthru
          _
        // Predicated region
        $region45: #{tpu_custom_call.1} parent=35 // pred_check
          %p221 = pneg %p85
        $region46: #{tpu_custom_call.1} parent=35 // pred_check_branch
          %223 = sbr.rel (%p221) target = $region48
        $region47: #{tpu_custom_call.1} parent=35 // pred_region
          %224 = dma.done [#allocation6], 256
        $region48: #{tpu_custom_call.1} parent=35 // pred_fallthru
          _
        %s225 = sand.u32 %s30, 1
        %s226 = scalar_lea.sflag [#allocation3], %s225
        %s227 = sand.u32 %s30, 1
        %s228 = smul.addr %s227, 8
        %s229 = scalar_lea.vmem [#allocation2], %s228
        %p230 = pneg %p43
        %p231 = pneg %p40
        %p232 = pneg %p64
        %p233 = pneg %p61
        %p234 = pneg %p85
        %p235 = pneg %p82
        %p236 = pneg %p106
        %p237 = pneg %p103
        %p238 = pneg %p132
        %p239 = pneg %p129
        %s240 = sand.u32 %s119, 1
        %s241 = scalar_lea.sflag [#allocation4], %s240
        %s242 = sand.u32 %s119, 1
        %s243 = smul.addr %s242, 16
        %s244 = scalar_lea.vmem [#allocation8], %s243
        %v246 = vld [vmem:[%s212] sm:$0xf]
        %v247 = vld [vmem:[%s212 + $0x4] sm:$0xf]
        %v248 = vld [vmem:[#allocation5] sm:$0xf]
        %v249 = vld [vmem:[#allocation5 + $0x4] sm:$0xf]
        %v250 = vld [vmem:[#allocation5 + $0x8] sm:$0xf]
        %v251 = vld [vmem:[#allocation5 + $0xc] sm:$0xf]
        %v252 = vld [vmem:[#allocation7] sm:$0xff]
        %v253 = vld [vmem:[#allocation7 + $0x8] sm:$0xff]
        %v254 = vld [vmem:[%s3] sm:$0xf]
        %v255 = vld [vmem:[%s3 + $0x4] sm:$0xf]
        %v258 = vunpack.c.l.b16 %v246
        %v259 = vunpack.c.l.b16 %v247
        %v260 = vpack.c.b16 %v259, %v258
        %v265 = vunpack.c.l.b16 %v248
        %v266 = vunpack.c.l.b16 %v249
        %v267 = vunpack.c.l.b16 %v250
        %v268 = vunpack.c.l.b16 %v251
        %v269 = vpack.c.b16 %v266, %v265
        %v270 = vpack.c.b16 %v268, %v267
        %vm273 = vcmask 261120
        %v275 = vsel %vm273, %v260, 0
        %277 = vmatprep.subr.bf16.mxu0 0
        %278 = vmatpush1.bf16.msra.mxu0 %v269
        %279 = vmatprep.subr.bf16.mxu0 0
        %280 = vmatpush1.bf16.msra.mxu0 %v270
        %281 = vmatprep.subr.bf16.mxu0 0
        %282 = vmatpush1.bf16.msra.mxu0 0
        %283 = vmatprep.subr.bf16.mxu0 0
        %284 = vmatpush1.bf16.msra.mxu0 0
        %285 = vmatprep.subr.bf16.mxu0 0
        %286 = vmatpush1.bf16.msra.mxu0 0
        %287 = vmatprep.subr.bf16.mxu0 0
        %288 = vmatpush1.bf16.msra.mxu0 0
        %289 = vmatprep.subr.bf16.mxu0 0
        %290 = vmatpush1.bf16.msra.mxu0 0
        %291 = vmatprep.subr.bf16.mxu0 0
        %292 = vmatpush1.bf16.msra.mxu0 0
        %293 = vmatprep.subr.bf16.mxu0 0
        %294 = vmatpush1.bf16.msra.mxu0 0
        %295 = vmatprep.subr.bf16.mxu0 0
        %296 = vmatpush1.bf16.msra.mxu0 0
        %297 = vmatprep.subr.bf16.mxu0 0
        %298 = vmatpush1.bf16.msra.mxu0 0
        %299 = vmatprep.subr.bf16.mxu0 0
        %300 = vmatpush1.bf16.msra.mxu0 0
        %301 = vmatprep.subr.bf16.mxu0 0
        %302 = vmatpush1.bf16.msra.mxu0 0
        %303 = vmatprep.subr.bf16.mxu0 0
        %304 = vmatpush1.bf16.msra.mxu0 0
        %305 = vmatprep.subr.bf16.mxu0 0
        %306 = vmatpush1.bf16.msra.mxu0 0
        %307 = vmatprep.subr.bf16.mxu0 0
        %308 = vmatpush1.bf16.msra.mxu0 0
        %309 = vmatprep.mubr.bf16.mxu0 0
        %310 = vmatmul.mubr.bf16.gmra.mrb[0].mxu0 %v275
        %v311 = vpop.f32.mrb[0].mxu0
        %v312 = vadd.f32 0.0, %v311
        %v313 = vpop.f32.mrb[0].mxu0
        %v314 = vpop.f32.mrb[0].mxu0
        %v315 = vadd.f32 0.0, %v314
        %v316 = vpop.f32.mrb[0].mxu0
        %317 = vdwg.mxu0
        %v318 = vpack.c.bf16 %v315, %v312
        %v320 = vsel %vm273, %v318, 0
        %322 = vmatprep.subr.bf16.mxu0 0
        %323 = vmatpush1.bf16.xpose.msra.mxu0 %v275
        %324 = vmatprep.subr.bf16.mxu0 0
        %325 = vmatpush1.bf16.xpose.msra.mxu0 0
        %326 = vmatprep.subr.bf16.mxu0 0
        %327 = vmatpush1.bf16.xpose.msra.mxu0 0
        %328 = vmatprep.subr.bf16.mxu0 0
        %329 = vmatpush1.bf16.xpose.msra.mxu0 0
        %330 = vmatprep.subr.bf16.mxu0 0
        %331 = vmatpush1.bf16.xpose.msra.mxu0 0
        %332 = vmatprep.subr.bf16.mxu0 0
        %333 = vmatpush1.bf16.xpose.msra.mxu0 0
        %334 = vmatprep.subr.bf16.mxu0 0
        %335 = vmatpush1.bf16.xpose.msra.mxu0 0
        %336 = vmatprep.subr.bf16.mxu0 0
        %337 = vmatpush1.bf16.xpose.msra.mxu0 0
        %338 = vmatprep.subr.bf16.mxu0 0
        %339 = vmatpush1.bf16.xpose.msra.mxu0 0
        %340 = vmatprep.subr.bf16.mxu0 0
        %341 = vmatpush1.bf16.xpose.msra.mxu0 0
        %342 = vmatprep.subr.bf16.mxu0 0
        %343 = vmatpush1.bf16.xpose.msra.mxu0 0
        %344 = vmatprep.subr.bf16.mxu0 0
        %345 = vmatpush1.bf16.xpose.msra.mxu0 0
        %346 = vmatprep.subr.bf16.mxu0 0
        %347 = vmatpush1.bf16.xpose.msra.mxu0 0
        %348 = vmatprep.subr.bf16.mxu0 0
        %349 = vmatpush1.bf16.xpose.msra.mxu0 0
        %350 = vmatprep.subr.bf16.mxu0 0
        %351 = vmatpush1.bf16.xpose.msra.mxu0 0
        %352 = vmatprep.subr.bf16.mxu0 0
        %353 = vmatpush1.bf16.xpose.msra.mxu0 0
        %354 = vmatprep.mubr.bf16.mxu0 0
        %355 = vmatmul.mubr.bf16.gmra.mrb[0].mxu0 %v320
        %v356 = vpop.f32.mrb[0].mxu0
        %v357 = vadd.f32 %v252, %v356
        %v358 = vpop.f32.mrb[0].mxu0
        %v359 = vpop.f32.mrb[0].mxu0
        %v360 = vadd.f32 %v253, %v359
        %v361 = vpop.f32.mrb[0].mxu0
        %362 = vdwg.mxu0
        %v363 = vxor.u32 %v357, 2147483648
        %v364 = vxor.u32 %v360, 2147483648
        %v365 = vmul.f32 %v363, 1.442695
        %v366 = vpow.pop %v365
        %v367 = vmul.f32 %v364, 1.442695
        %v368 = vpow.pop %v367
        %v369 = vadd.f32 %v366, 1.0
        %v370 = vadd.f32 %v368, 1.0
        %v371 = vrcp.pop %v369
        %v372 = vmul.f32 1.0, %v371
        %v373 = vrcp.pop %v370
        %v374 = vmul.f32 1.0, %v373
        %v375 = vpack.c.bf16 %v374, %v372
        %v378 = vunpack.c.l.b16 %v254
        %v379 = vunpack.c.l.b16 %v255
        %v380 = vpack.c.b16 %v379, %v378
        %vm381 = vcmask 130048
        %v383 = vsel %vm381, %v380, 0
        %385 = vmatprep.subr.bf16.mxu0 0
        %386 = vmatpush1.bf16.msra.mxu0 %v375
        %387 = vmatprep.subr.bf16.mxu0 0
        %388 = vmatpush1.bf16.msra.mxu0 0
        %389 = vmatprep.subr.bf16.mxu0 0
        %390 = vmatpush1.bf16.msra.mxu0 0
        %391 = vmatprep.subr.bf16.mxu0 0
        %392 = vmatpush1.bf16.msra.mxu0 0
        %393 = vmatprep.subr.bf16.mxu0 0
        %394 = vmatpush1.bf16.msra.mxu0 0
        %395 = vmatprep.subr.bf16.mxu0 0
        %396 = vmatpush1.bf16.msra.mxu0 0
        %397 = vmatprep.subr.bf16.mxu0 0
        %398 = vmatpush1.bf16.msra.mxu0 0
        %399 = vmatprep.subr.bf16.mxu0 0
        %400 = vmatpush1.bf16.msra.mxu0 0
        %401 = vmatprep.subr.bf16.mxu0 0
        %402 = vmatpush1.bf16.msra.mxu0 0
        %403 = vmatprep.subr.bf16.mxu0 0
        %404 = vmatpush1.bf16.msra.mxu0 0
        %405 = vmatprep.subr.bf16.mxu0 0
        %406 = vmatpush1.bf16.msra.mxu0 0
        %407 = vmatprep.subr.bf16.mxu0 0
        %408 = vmatpush1.bf16.msra.mxu0 0
        %409 = vmatprep.subr.bf16.mxu0 0
        %410 = vmatpush1.bf16.msra.mxu0 0
        %411 = vmatprep.subr.bf16.mxu0 0
        %412 = vmatpush1.bf16.msra.mxu0 0
        %413 = vmatprep.subr.bf16.mxu0 0
        %414 = vmatpush1.bf16.msra.mxu0 0
        %415 = vmatprep.subr.bf16.mxu0 0
        %416 = vmatpush1.bf16.msra.mxu0 0
        %417 = vmatprep.mubr.bf16.mxu0 0
        %418 = vmatmul.mubr.bf16.gmra.mrb[0].mxu0 %v383
        %v419 = vpop.f32.mrb[0].mxu0
        %v420 = vadd.f32 0.0, %v419
        %v421 = vpop.f32.mrb[0].mxu0
        %v422 = vpop.f32.mrb[0].mxu0
        %v423 = vadd.f32 0.0, %v422
        %v424 = vpop.f32.mrb[0].mxu0
        %425 = vdwg.mxu0
        %v426 = vsel %vm381, %v420, -inf
        %v427 = vsel %vm381, %v423, -inf
        %v428 = vmax.f32 %v426, %v427
        %v429 = vrot.slane %v428, 4
        %v430 = vmax.f32 %v428, %v429
        %v431 = vrot.slane %v430, 2
        %v432 = vmax.f32 %v430, %v431
        %v433 = vrot.slane %v432, 1
        %v434 = vmax.f32 %v432, %v433
        %v435 = vsub.f32 %v420, %v434
        %v436 = vsub.f32 %v423, %v434
        %v437 = vmul.f32 %v435, 1.442695
        %v438 = vpow.pop %v437
        %v439 = vmul.f32 %v436, 1.442695
        %v440 = vpow.pop %v439
        %v441 = vsel %vm381, %v438, 0.0
        %v442 = vsel %vm381, %v440, 0.0
        %v443 = vadd.f32 %v441, %v442
        %v444 = vrot.slane %v443, 4
        %v445 = vadd.f32 %v443, %v444
        %v446 = vrot.slane %v445, 2
        %v447 = vadd.f32 %v445, %v446
        %v448 = vrot.slane %v447, 1
        %v449 = vadd.f32 %v447, %v448
        %v450 = vrcp.pop %v449
        %v451 = vmul.f32 %v438, %v450
        %v452 = vmul.f32 %v440, %v450
        %453 = vst.msk [vmem:[%s244] sm:$0xff] %vm381, %v451
        %454 = vst.msk [vmem:[%s244 + $0x8] sm:$0xff] %vm381, %v452
        %s455 = sand.u32 %s119, 1
        %s456 = scalar_lea.sflag [#allocation4], %s455
        %s457 = sand.u32 %s119, 1
        %s458 = smul.addr %s457, 16
        %s459 = scalar_lea.vmem [#allocation8], %s458
        // Predicated region
        $region49: #{tpu_custom_call.1} parent=35 // pred_check
          %p460 = pneg %p129
        $region50: #{tpu_custom_call.1} parent=35 // pred_check_branch
          %462 = sbr.rel (%p460) target = $region52
        $region51: #{tpu_custom_call.1} parent=35 // pred_region
          %s464 = ssub.s32 256, 256
          %465 = vsyncadd %s456, %s464
          %s466 = smul.addr %s22, 2
          %s467 = smul.addr %s466, 128
          %s468 = scalar_lea.hbm %s4, %s467
          %s469 = sshll.u32 %s459, 4
          %s470 = int_to_ptr.vmem [resolvable:$true] %s469
          %475 = dma.vmem_to_hbm [thread:$0]  %s470, 256, %s468, %s456, 128, 128, 8
        $region52: #{tpu_custom_call.1} parent=35 // pred_fallthru
          _
      $region36: #{tpu_custom_call.1} parent=5 // pred_fallthru
        _
      %p476 = scmp.le.s32.totalorder 2, %s17
      // Predicated region
      $region53: #{tpu_custom_call.1} parent=5 // pred_check
        %p477 = pneg %p476
      $region54: #{tpu_custom_call.1} parent=5 // pred_check_branch
        %479 = sbr.rel (%p477) target = $region56
      $region55: #{tpu_custom_call.1} parent=5 // pred_region
        %s480 = ssub.s32 %s17, 2
        // Predicated region
        $region57: #{tpu_custom_call.1} parent=55 // pred_check
          %p481 = pneg %p135
        $region58: #{tpu_custom_call.1} parent=55 // pred_check_branch
          %483 = sbr.rel (%p481) target = $region60
        $region59: #{tpu_custom_call.1} parent=55 // pred_region
          %s484 = sand.u32 %s120, 1
          %s485 = scalar_lea.sflag [#allocation4], %s484
          %s486 = sand.u32 %s120, 1
          %s487 = smul.addr %s486, 16
          %s488 = scalar_lea.vmem [#allocation8], %s487
          %489 = dma.done %s485, 256
        $region60: #{tpu_custom_call.1} parent=55 // pred_fallthru
          _
      $region56: #{tpu_custom_call.1} parent=5 // pred_fallthru
        _
    $region6: #{tpu_custom_call.1} parent=1 // loop_footer
      %s21 = sadd.s32 1, %s17
    $region7: #{tpu_custom_call.1} parent=1 // loop_footer_branch
      %16 = sbr.rel target = $region3
    $region8: #{tpu_custom_call.1} parent=1 // loop_exit
      _
    %490 = vsyncpa [#allocation3], 1
    %s491 = scalar_lea.sflag [#allocation3], 1
    %492 = vsyncpa %s491, 1
    %493 = vsyncpa [#allocation6], 1
    %494 = vsyncpa [#allocation4], 1
    %s495 = scalar_lea.sflag [#allocation4], 1
    %496 = vsyncpa %s495, 1

</llo_original>
